<compile_context>
chip_gen: v5e
topology: v5e:2x2
jax: 0.10.0
libtpu: 0.0.40
codegen_flags: <defaults>
</compile_context>

<pallas_src>
import functools

import jax
import jax.numpy as jnp
from jax.experimental import pallas as pl
from jax.experimental.pallas import tpu as pltpu


_TARGET_TILE_ELEMS = 512 * 1024   # ~2 MiB per f32 tile
_MIN_PALLAS_ELEMS = 1 << 16       # below this, pure-jnp (XLA-fused) path is strictly faster
_LANE_CHOICES = (1024, 512, 256, 128)


def _act_quant_kernel(x_ref, o_ref, *, scale: float):
    # output = clamp(x * 0.1, 0, 1); output = round(output / scale) * scale
    # Compute in f32 inside the vregs (v5e has no bf16 VPU path anyway); cast on store.
    x = x_ref[...].astype(jnp.float32)
    y = jnp.clip(x * 0.1, 0.0, 1.0)
    # Keep the division for bit-parity with torch (scale is a compile-time constant;
    # the div is hidden under the HBM-bound pipeline).
    q = jnp.round(y / scale) * scale   # jnp.round == torch.round (half-to-even)
    o_ref[...] = q.astype(o_ref.dtype)


def _act_quant_jnp(x: jax.Array, scale: float) -> jax.Array:
    y = jnp.clip(x.astype(jnp.float32) * 0.1, 0.0, 1.0)
    return (jnp.round(y / scale) * scale).astype(x.dtype)


def _pick_lane_width(n: int) -> tuple[int, bool]:
    """Return (lane_width, needs_padding) for a flat element count n."""
    for w in _LANE_CHOICES:
        if n % w == 0:
            return w, False
    # Truly ragged: pad.  Use a wide lane dim for big tensors, a narrow one for small
    # ones (less padding waste); either way stores stay unmasked (multiple of 128).
    return (1024 if n >= (1 << 20) else 128), True


def activation_quantizer(x: jax.Array, a_bits: int, *, force_pallas: bool = False) -> jax.Array:
    """Forward of ActivationQuantizer(a_bits) on an arbitrary-shaped tensor (e.g. NCHW)."""
    if a_bits == 32:
        return x
    if a_bits == 1:
        raise AssertionError("! Binary quantization is not supported !")

    scale = 1.0 / float(2 ** a_bits - 1)

    n = x.size
    if n < _MIN_PALLAS_ELEMS and not force_pallas:
        # Tiny activation maps: let XLA fuse the quantizer into the producer.
        return _act_quant_jnp(x, scale)

    # ---- lane-dense 2D view: (rows, w), w a multiple of 128 ----
    w, needs_pad = _pick_lane_width(n)
    rows = pl.cdiv(n, w)
    pad = rows * w - n
    flat = x.reshape(-1)
    if needs_pad and pad:
        flat = jnp.pad(flat, (0, pad))
    x2 = flat.reshape(rows, w)

    # Row-tile: ~2 MiB f32 worth of elements, multiple of 8 sublanes; full extent if small.
    tr = max(8, (_TARGET_TILE_ELEMS // w) // 8 * 8)
    if rows <= tr:
        tr = rows  # single full-extent block (allowed even if not a multiple of 8)
    grid = (pl.cdiv(rows, tr),)

    kernel = functools.partial(_act_quant_kernel, scale=scale)
    out2 = pl.pallas_call(
        kernel,
        out_shape=jax.ShapeDtypeStruct((rows, w), x.dtype),
        grid=grid,
        in_specs=[pl.BlockSpec((tr, w), lambda i: (i, 0))],
        out_specs=pl.BlockSpec((tr, w), lambda i: (i, 0)),
        compiler_params=pltpu.CompilerParams(
            dimension_semantics=("parallel",),
        ),
    )(x2)

    out = out2.reshape(-1)
    if needs_pad and pad:
        out = out[:n]
    return out.reshape(x.shape)


def _reference(x: jax.Array, a_bits: int) -> jax.Array:
    if a_bits == 32:
        return x
    scale = 1.0 / float(2 ** a_bits - 1)
    y = jnp.clip(x.astype(jnp.float32) * 0.1, 0.0, 1.0)
    return (jnp.round(y / scale) * scale).astype(x.dtype)


if __name__ == "__main__":
    key = jax.random.PRNGKey(0)
    a_bits = 8

    # 1) Small NCHW activation map (forced through the Pallas path to exercise the kernel).
    x = jax.random.normal(key, (2, 4, 16, 16), dtype=jnp.float32) * 5.0
    out = jax.block_until_ready(activation_quantizer(x, a_bits, force_pallas=True))
    ref = _reference(x, a_bits)
    assert out.shape == x.shape and out.dtype == x.dtype
    assert jnp.allclose(out, ref, atol=1e-6), "mismatch vs reference (small NCHW)"

    # 2) Ragged element count (3*5*7*11 = 1155): exercises the pad / partial-block path.
    x2 = jax.random.normal(jax.random.PRNGKey(1), (3, 5, 7, 11), dtype=jnp.float32) * 3.0
    out2 = jax.block_until_ready(activation_quantizer(x2, a_bits, force_pallas=True))
    assert jnp.allclose(out2, _reference(x2, a_bits), atol=1e-6), "mismatch vs reference (ragged)"

    # 3) bf16 input stays bf16 across the DMA; math in f32 inside the kernel.
    xb = (jax.random.normal(jax.random.PRNGKey(2), (2, 4, 16, 16)) * 5.0).astype(jnp.bfloat16)
    outb = jax.block_until_ready(activation_quantizer(xb, a_bits, force_pallas=True))
    assert outb.dtype == jnp.bfloat16
    assert jnp.allclose(outb.astype(jnp.float32),
                        _reference(xb, a_bits).astype(jnp.float32), atol=1e-2)

    # 4) Larger tensor divisible by a narrower lane width (exercises w=512, multi-row grid).
    x3 = jax.random.normal(jax.random.PRNGKey(3), (2, 8, 24, 24), dtype=jnp.float32) * 4.0
    out3 = jax.block_until_ready(activation_quantizer(x3, a_bits, force_pallas=True))
    assert jnp.allclose(out3, _reference(x3, a_bits), atol=1e-6), "mismatch vs reference (w<1024)"

    # 5) a_bits == 32 pass-through path.
    out32 = jax.block_until_ready(activation_quantizer(x, 32))
    assert jnp.array_equal(out32, x)

    print("KERNEL_OK")
</pallas_src>

<mosaic_0001>
module attributes {stable_mosaic.version = 11 : i64} {
  func.func @_act_quant_kernel(%arg0: i32, %arg1: memref<2x1024xf32, #tpu.memory_space<vmem>>, %arg2: memref<2x1024xf32, #tpu.memory_space<vmem>>) attributes {dimension_semantics = [#tpu.dimension_semantics<parallel>], iteration_bounds = array<i64: 1>, scalar_prefetch = 0 : i64, scratch_operands = 0 : i64, tpu.core_type = #tpu.core_type<tc>, window_params = [{transform_indices = @transform_0, window_bounds = array<i64: 2, 1024>}, {transform_indices = @transform_1, window_bounds = array<i64: 2, 1024>}]} {
    %c0 = arith.constant 0 : index
    %c0_0 = arith.constant 0 : index
    %0 = vector.load %arg1[%c0, %c0_0] : memref<2x1024xf32, #tpu.memory_space<vmem>>, vector<2x1024xf32>
    %cst = arith.constant 1.000000e-01 : f32
    %1 = vector.broadcast %cst : f32 to vector<2x1024xf32>
    %2 = arith.mulf %0, %1 : vector<2x1024xf32>
    %cst_1 = arith.constant 0.000000e+00 : f32
    %cst_2 = arith.constant 1.000000e+00 : f32
    %3 = vector.broadcast %cst_1 : f32 to vector<2x1024xf32>
    %4 = arith.maximumf %3, %2 : vector<2x1024xf32>
    %5 = vector.broadcast %cst_2 : f32 to vector<2x1024xf32>
    %6 = arith.minimumf %5, %4 : vector<2x1024xf32>
    %cst_3 = arith.constant 0.00392156886 : f32
    %7 = vector.broadcast %cst_3 : f32 to vector<2x1024xf32>
    %8 = arith.divf %6, %7 : vector<2x1024xf32>
    %9 = math.roundeven %8 : vector<2x1024xf32>
    %cst_4 = arith.constant 0.00392156886 : f32
    %10 = vector.broadcast %cst_4 : f32 to vector<2x1024xf32>
    %11 = arith.mulf %9, %10 : vector<2x1024xf32>
    %c0_5 = arith.constant 0 : index
    %c0_6 = arith.constant 0 : index
    %12 = vector.load %arg2[%c0_5, %c0_6] : memref<2x1024xf32, #tpu.memory_space<vmem>>, vector<2x1024xf32>
    tpu.vector_store %arg2[%c0_5, %c0_6], %11 {strides = array<i32>} : memref<2x1024xf32, #tpu.memory_space<vmem>>, vector<2x1024xf32>,
    return
  }
  func.func @transform_0(%arg0: i32) -> (i32, i32) {
    %c0_i32 = arith.constant 0 : i32
    %c0_i32_0 = arith.constant 0 : i32
    return %arg0, %c0_i32 : i32, i32
  }
  func.func @transform_1(%arg0: i32) -> (i32, i32) {
    %c0_i32 = arith.constant 0 : i32
    %c0_i32_0 = arith.constant 0 : i32
    return %arg0, %c0_i32 : i32, i32
  }
}

</mosaic_0001>

<llo_original>
// kernel: tpu_custom_call.1
$region0: #{tpu_custom_call.1}
  #allocation0 [shape = 'u32[]', space=smem, size = 0x4, offset = 0x4, fixed_abs, tag = 'smem constant byte address 0x4 - core index']
  #allocation1 [shape = 'u32[72,128]{1,0:T(1,128)}', space=vmem, size = 0x9000, scoped, tag = 'internal scratch']
  %s0 = inlined_call_operand.hbm [shape: f32[2,1024], index: 0, kind: input, shape index: {}]
  %s1 = inlined_call_operand.hbm [shape: f32[2,1024], index: 1, kind: output, shape index: {}]
  %s2 = sld [smem:[#allocation0]]
  $region18: #{tpu_custom_call.1} parent=0
    _
  %s4 = ssub.s32 1, %s2
  %s5 = scalar_select 0, %s4, %s2
  $region1: #{tpu_custom_call.1} parent=0
    #allocation2 [shape = 'u8[8192]{0}', space=vmem, size = 0x2000, scoped, tag = 'input window, operand 0, single buffered']
    #allocation3 [shape = 's32[1]{0}', space=sflag, size = 0x4, scoped, tag = 'scoped memory for tpu_custom_call.1']
    #allocation4 [shape = 's32[1]{0}', space=sflag, size = 0x4, scoped, tag = 'scoped memory for tpu_custom_call.1']
    #allocation5 [shape = 'u8[8192]{0}', space=vmem, size = 0x2000, scoped, tag = 'output window, operand 0, single buffered']
    %6 = vsyncpa [#allocation3], 0
    %7 = vsyncpa [#allocation4], 0
    // Predicated region
    $region2: #{tpu_custom_call.1} parent=1 // pred_check
      _
    $region3: #{tpu_custom_call.1} parent=1 // pred_check_branch
      %9 = sbr.rel (0) target = $region5
    $region4: #{tpu_custom_call.1} parent=1 // pred_region
      %11 = vsyncadd [#allocation3], 0
      %s13 = sshll.u32 %s0, 4
      %s14 = int_to_ptr.hbm [resolvable:$true] %s13
      %s15 = sshll.u32 [#allocation2], 4
      %s16 = int_to_ptr.vmem [resolvable:$true] %s15
      %18 = dma.hbm_to_vmem [thread:$0]  %s14, 256, %s16, [#allocation3]
    $region5: #{tpu_custom_call.1} parent=1 // pred_fallthru
      _
    // Predicated region
    $region6: #{tpu_custom_call.1} parent=1 // pred_check
      _
    $region7: #{tpu_custom_call.1} parent=1 // pred_check_branch
      %20 = sbr.rel (0) target = $region9
    $region8: #{tpu_custom_call.1} parent=1 // pred_region
      %22 = dma.done [#allocation3], 256
    $region9: #{tpu_custom_call.1} parent=1 // pred_fallthru
      _
    %v23 = vld [vmem:[#allocation2] sm:$0xff]
    %v24 = vld [vmem:[#allocation2 + $0x8] sm:$0xff]
    %v25 = vmul.f32 %v23, 0.1
    %v26 = vmul.f32 %v24, 0.1
    %v27 = vmax.f32 %v25, 0.0
    %v28 = vmax.f32 %v26, 0.0
    %v29 = vmin.f32 %v27, 1.0
    %v30 = vmin.f32 %v28, 1.0
    %v31 = vrcp.pop 0.003921569
    %v32 = vmul.f32 0.003921569, %v31
    %v33 = vsub.f32 1.0, %v32
    %v34 = vmul.f32 %v31, %v33
    %v35 = vadd.f32 %v31, %v34
    %vm36 = vweird.f32 %v31
    %v37 = vsel %vm36, %v31, %v35
    %v38 = vmul.f32 %v29, %v37
    %v39 = vmul.f32 %v30, %v37
    %v40 = vround.ne.pseudo %v38
    %v41 = vround.ne.pseudo %v39
    %v42 = vmul.f32 %v40, 0.003921569
    %v43 = vmul.f32 %v41, 0.003921569
    %44 = vst [vmem:[#allocation5] sm:$0xff] %v42
    %45 = vst [vmem:[#allocation5 + $0x8] sm:$0xff] %v43
    // Predicated region
    $region10: #{tpu_custom_call.1} parent=1 // pred_check
      _
    $region11: #{tpu_custom_call.1} parent=1 // pred_check_branch
      %47 = sbr.rel (0) target = $region13
    $region12: #{tpu_custom_call.1} parent=1 // pred_region
      %49 = vsyncadd [#allocation4], 0
      %s51 = sshll.u32 [#allocation5], 4
      %s52 = int_to_ptr.vmem [resolvable:$true] %s51
      %s53 = sshll.u32 %s1, 4
      %s54 = int_to_ptr.hbm [resolvable:$true] %s53
      %56 = dma.vmem_to_hbm [thread:$0]  %s52, 256, %s54, [#allocation4]
    $region13: #{tpu_custom_call.1} parent=1 // pred_fallthru
      _
    // Predicated region
    $region14: #{tpu_custom_call.1} parent=1 // pred_check
      _
    $region15: #{tpu_custom_call.1} parent=1 // pred_check_branch
      %58 = sbr.rel (0) target = $region17
    $region16: #{tpu_custom_call.1} parent=1 // pred_region
      %60 = dma.done [#allocation4], 256
    $region17: #{tpu_custom_call.1} parent=1 // pred_fallthru
      _
    %61 = vsyncpa [#allocation3], 1
    %62 = vsyncpa [#allocation4], 1

</llo_original>
